<compile_context>
chip_gen: v7x
topology: tpu7x:2x2x1
jax: 0.10.0
libtpu: 0.0.40
codegen_flags: <defaults>
</compile_context>

<pallas_src>
import jax
import jax.numpy as jnp
from jax.experimental import pallas as pl
from jax.experimental.pallas import tpu as pltpu


# ----------------------------------------------------------------------------
# Pallas kernel: one (NB, C, TM) tile (NB images, channels on sublanes, TM
# spatial positions on lanes).  Per image b:
#   s    = relu(Wg^T @ G_b + Wx^T @ X_b + b_gx)     (F_int, TM)  f32 accumulate
#   psi  = sigmoid(sum_c wp[c] * s[c, :] + bp)      (1, TM)      sublane reduce
#   out  = X_b * psi                                 (F_l, TM)    native store
# ----------------------------------------------------------------------------
def _attention_gate_kernel(g_ref, x_ref, wg_t_ref, wx_t_ref, bgx_ref,
                           wp_ref, bp_ref, o_ref):
    # Constant operands loaded once per grid step (outside the NB loop).
    wg_t = wg_t_ref[...]          # (F_int, F_g)   activation dtype (bf16/f32)
    wx_t = wx_t_ref[...]          # (F_int, F_l)
    bgx = bgx_ref[...]            # (F_int, 1)     f32, bg + bx (BN folded)
    wp = wp_ref[...]              # (F_int, 1)     f32
    bp = bp_ref[...]              # (1, 1)         f32

    nb = g_ref.shape[0]
    for b in range(nb):           # static unroll, NB is small (<= tm // HW)
        g = g_ref[b]              # (F_g, TM) native dtype -> straight to MXU
        x = x_ref[b]              # (F_l, TM)
        s = jnp.dot(wg_t, g, preferred_element_type=jnp.float32)
        s = s + jnp.dot(wx_t, x, preferred_element_type=jnp.float32)
        s = jnp.maximum(s + bgx, 0.0)                      # f32 elementwise
        # 1-output-channel 1x1 conv == weighted sublane reduction (f32).
        psi_lin = jnp.sum(s * wp, axis=0, keepdims=True) + bp
        psi = jax.nn.sigmoid(psi_lin)                      # (1, TM) f32
        # Gating multiply in the store dtype; psi cast once (f32 on v5e-style
        # f32 inputs, bf16 on the bf16 I/O path).
        o_ref[b] = (x * psi.astype(x.dtype)).astype(o_ref.dtype)


def attention_gate_pallas(g3, x3, wg_t, wx_t, b_gx, wp_col, bp_s, *, tm=1024,
                          vmem_budget_bytes=40 * 1024 * 1024):
    """g3: (N, F_g, HW), x3: (N, F_l, HW) channels-on-sublanes layout.
    wg_t/wx_t: (F_int, F_g)/(F_int, F_l) BN-folded, in the activation dtype.
    b_gx/wp_col: (F_int, 1) f32, bp_s: (1, 1) f32."""
    N, F_g, HW = g3.shape
    _, F_l, _ = x3.shape
    F_int = wg_t.shape[0]
    act_bytes = jnp.dtype(g3.dtype).itemsize

    # ---- tile geometry ------------------------------------------------------
    if HW >= tm:
        # Large maps: tile the spatial axis (lane tile multiple of 128),
        # one image per grid step.
        nb = 1
        tmm = max(128, (tm // 128) * 128)
    else:
        # Small maps: take the full map and block over batch instead, so each
        # grid step DMAs one fully contiguous (NB, C, HW) slab.
        tmm = HW
        nb = min(N, max(1, tm // HW))

    def block_bytes(nb_, tmm_):
        tiles = (F_g + 2 * F_l) * nb_ * tmm_ * act_bytes          # g, x, out
        weights = F_int * (F_g + F_l) * act_bytes + (2 * F_int + 1) * 4
        live = (F_int + 1) * nb_ * tmm_ * 4                       # s, psi (f32)
        return 2 * tiles + 2 * weights + live                     # double-buffered

    # Shrink the tile until the pipelined working set fits the VMEM budget
    # (v7x only has 64 MiB per TensorCore vs 128 MiB on v5e/v6e).
    while block_bytes(nb, tmm) > vmem_budget_bytes:
        if nb > 1:
            nb = max(1, nb // 2)
        elif tmm > 128 and tmm % 128 == 0:
            tmm = max(128, ((tmm // 2) // 128) * 128)
        else:
            break

    grid = (pl.cdiv(N, nb), pl.cdiv(HW, tmm))
    vmem_limit = int(min(56 * 1024 * 1024,
                         max(32 * 1024 * 1024, 2 * block_bytes(nb, tmm))))

    const = lambda shape: pl.BlockSpec(shape, lambda n, j: (0, 0))

    return pl.pallas_call(
        _attention_gate_kernel,
        out_shape=jax.ShapeDtypeStruct((N, F_l, HW), x3.dtype),
        grid_spec=pltpu.PrefetchScalarGridSpec(
            num_scalar_prefetch=0,
            grid=grid,
            in_specs=[
                pl.BlockSpec((nb, F_g, tmm), lambda n, j: (n, 0, j)),  # g slab
                pl.BlockSpec((nb, F_l, tmm), lambda n, j: (n, 0, j)),  # x slab
                const((F_int, F_g)),    # Wg^T (BN-folded, activation dtype)
                const((F_int, F_l)),    # Wx^T (BN-folded, activation dtype)
                const((F_int, 1)),      # b_gx = bg + bx (f32)
                const((F_int, 1)),      # wp column (f32)
                const((1, 1)),          # bp (f32)
            ],
            out_specs=pl.BlockSpec((nb, F_l, tmm), lambda n, j: (n, 0, j)),
        ),
        compiler_params=pltpu.CompilerParams(
            dimension_semantics=("parallel", "parallel"),
            vmem_limit_bytes=vmem_limit),
    )(g3, x3, wg_t, wx_t, b_gx, wp_col, bp_s)


# ----------------------------------------------------------------------------
# BN folding + layout glue (plain JAX) and deterministic parameter creation.
# ----------------------------------------------------------------------------
def _fold_bn(w, b, gamma, beta, mean, var, eps=1e-5):
    """Fold inference-mode BatchNorm into a preceding 1x1 conv.
    w: (C_in, C_out), b: (C_out,). Returns folded (w, b)."""
    scale = gamma / jnp.sqrt(var + eps)              # (C_out,)
    w_f = w * scale[None, :]
    b_f = (b - mean) * scale + beta
    return w_f, b_f


def make_params(key, F_g, F_l, F_int):
    ks = jax.random.split(key, 18)
    p = {}
    # 1x1 conv weights stored as (C_in, C_out); transposed to (C_out, C_in)
    # for the channels-on-sublanes kernel in the wrapper.
    p["wg_w"] = jax.random.normal(ks[0], (F_g, F_int), jnp.float32) * 0.2
    p["wg_b"] = jax.random.normal(ks[1], (F_int,), jnp.float32) * 0.1
    p["wx_w"] = jax.random.normal(ks[2], (F_l, F_int), jnp.float32) * 0.2
    p["wx_b"] = jax.random.normal(ks[3], (F_int,), jnp.float32) * 0.1
    p["wp_w"] = jax.random.normal(ks[4], (F_int, 1), jnp.float32) * 0.2
    p["wp_b"] = jax.random.normal(ks[5], (1,), jnp.float32) * 0.1
    # BatchNorm params (inference-mode running stats).
    for i, (name, C) in enumerate([("bng", F_int), ("bnx", F_int), ("bnp", 1)]):
        kg, kb, km, kv = ks[6 + 4 * i: 10 + 4 * i]
        p[name + "_gamma"] = 1.0 + 0.1 * jax.random.normal(kg, (C,), jnp.float32)
        p[name + "_beta"] = 0.1 * jax.random.normal(kb, (C,), jnp.float32)
        p[name + "_mean"] = 0.1 * jax.random.normal(km, (C,), jnp.float32)
        p[name + "_var"] = jnp.abs(1.0 + 0.1 * jax.random.normal(kv, (C,), jnp.float32))
    return p


def attention_gate(g_nchw, x_nchw, params, *, tm=1024,
                   activation_dtype=jnp.bfloat16):
    """Full forward. g: (N, F_g, H, W), x: (N, F_l, H, W) NCHW (PyTorch layout).
    Returns (N, F_l, H, W) in `activation_dtype` (bf16 by default: halves HBM
    traffic of this memory-bound kernel; pass jnp.float32 for exact math)."""
    N, F_g, H, W = g_nchw.shape
    _, F_l, _, _ = x_nchw.shape
    F_int = params["wg_w"].shape[1]
    HW = H * W
    act_dtype = jnp.dtype(activation_dtype)

    # Fold inference-mode BN into the conv weights.
    # TODO(synk): training-mode BatchNorm (batch statistics) is not implemented;
    # this matches nn.BatchNorm2d in eval() mode.
    wg, bg = _fold_bn(params["wg_w"], params["wg_b"], params["bng_gamma"],
                      params["bng_beta"], params["bng_mean"], params["bng_var"])
    wx, bx = _fold_bn(params["wx_w"], params["wx_b"], params["bnx_gamma"],
                      params["bnx_beta"], params["bnx_mean"], params["bnx_var"])
    wp, bp = _fold_bn(params["wp_w"], params["wp_b"], params["bnp_gamma"],
                      params["bnp_beta"], params["bnp_mean"], params["bnp_var"])

    # Transposed weights in the activation dtype (MXU operands); biases and the
    # psi column stay f32 (post-MXU accumulation path).
    wg_t = wg.T.astype(act_dtype)                    # (F_int, F_g)
    wx_t = wx.T.astype(act_dtype)                    # (F_int, F_l)
    b_gx = (bg + bx).reshape(F_int, 1).astype(jnp.float32)
    wp_col = wp.reshape(F_int, 1).astype(jnp.float32)
    bp_s = bp.reshape(1, 1).astype(jnp.float32)

    # NCHW consumed directly: merging H,W is a free reshape (no transpose/pad);
    # the dtype cast is the bf16 I/O path that halves HBM traffic.
    g3 = g_nchw.reshape(N, F_g, HW).astype(act_dtype)
    x3 = x_nchw.reshape(N, F_l, HW).astype(act_dtype)

    out3 = attention_gate_pallas(g3, x3, wg_t, wx_t, b_gx, wp_col, bp_s, tm=tm)
    return out3.reshape(N, F_l, H, W)


# Pure-JAX reference for verification (NCHW, inference-mode BN, f32).
def attention_gate_ref(g_nchw, x_nchw, params):
    def conv1x1_bn(t, w, b, gamma, beta, mean, var, eps=1e-5):
        y = jnp.einsum("nchw,co->nohw", t, w) + b[None, :, None, None]
        scale = gamma / jnp.sqrt(var + eps)
        return (y - mean[None, :, None, None]) * scale[None, :, None, None] \
            + beta[None, :, None, None]

    g1 = conv1x1_bn(g_nchw, params["wg_w"], params["wg_b"], params["bng_gamma"],
                    params["bng_beta"], params["bng_mean"], params["bng_var"])
    x1 = conv1x1_bn(x_nchw, params["wx_w"], params["wx_b"], params["bnx_gamma"],
                    params["bnx_beta"], params["bnx_mean"], params["bnx_var"])
    s = jnp.maximum(g1 + x1, 0.0)
    psi = conv1x1_bn(s, params["wp_w"], params["wp_b"], params["bnp_gamma"],
                     params["bnp_beta"], params["bnp_mean"], params["bnp_var"])
    psi = jax.nn.sigmoid(psi)
    return x_nchw * psi


if __name__ == "__main__":
    key = jax.random.PRNGKey(0)
    k_g, k_x, k_p, k_g2, k_x2, k_p2 = jax.random.split(key, 6)

    # --- small shape: exercises the batch-blocked (contiguous slab) path ----
    N, F_g, F_l, F_int, H, W = 2, 8, 8, 4, 16, 16
    g = jax.random.normal(k_g, (N, F_g, H, W), jnp.float32)
    x = jax.random.normal(k_x, (N, F_l, H, W), jnp.float32)
    params = make_params(k_p, F_g, F_l, F_int)
    ref = jax.block_until_ready(attention_gate_ref(g, x, params))

    # Strict numerical check: f32 activations (same math as before).
    out_f32 = jax.block_until_ready(
        attention_gate(g, x, params, activation_dtype=jnp.float32))
    assert out_f32.shape == (N, F_l, H, W)
    err_f32 = jnp.max(jnp.abs(out_f32 - ref))
    assert jnp.allclose(out_f32, ref, atol=1e-5, rtol=1e-5), \
        f"f32 max abs err {err_f32}"

    # Default performance path: bf16 activations, weights and output.
    out_bf16 = jax.block_until_ready(attention_gate(g, x, params))
    assert out_bf16.dtype == jnp.bfloat16 and out_bf16.shape == (N, F_l, H, W)
    err_bf16 = jnp.max(jnp.abs(out_bf16.astype(jnp.float32) - ref))
    assert err_bf16 < 5e-2, f"bf16 max abs err {err_bf16}"

    # --- larger map: exercises the spatial-tiled path with a ragged tail ----
    N2, F_g2, F_l2, F_int2, H2, W2 = 3, 16, 24, 8, 40, 40   # HW=1600 > tm=1024
    g2 = jax.random.normal(k_g2, (N2, F_g2, H2, W2), jnp.float32)
    x2 = jax.random.normal(k_x2, (N2, F_l2, H2, W2), jnp.float32)
    params2 = make_params(k_p2, F_g2, F_l2, F_int2)
    ref2 = jax.block_until_ready(attention_gate_ref(g2, x2, params2))

    out2_f32 = jax.block_until_ready(
        attention_gate(g2, x2, params2, activation_dtype=jnp.float32))
    err2_f32 = jnp.max(jnp.abs(out2_f32 - ref2))
    assert jnp.allclose(out2_f32, ref2, atol=1e-4, rtol=1e-4), \
        f"f32 (tiled) max abs err {err2_f32}"

    out2_bf16 = jax.block_until_ready(attention_gate(g2, x2, params2))
    err2_bf16 = jnp.max(jnp.abs(out2_bf16.astype(jnp.float32) - ref2))
    assert err2_bf16 < 1e-1, f"bf16 (tiled) max abs err {err2_bf16}"

    print("KERNEL_OK")
</pallas_src>

<mosaic_0001>
module attributes {stable_mosaic.version = 11 : i64} {
  func.func @_attention_gate_kernel(%arg0: i32, %arg1: i32, %arg2: memref<2x8x256xf32, #tpu.memory_space<vmem>>, %arg3: memref<2x8x256xf32, #tpu.memory_space<vmem>>, %arg4: memref<4x8xf32, #tpu.memory_space<vmem>>, %arg5: memref<4x8xf32, #tpu.memory_space<vmem>>, %arg6: memref<4x1xf32, #tpu.memory_space<vmem>>, %arg7: memref<4x1xf32, #tpu.memory_space<vmem>>, %arg8: memref<1x1xf32, #tpu.memory_space<vmem>>, %arg9: memref<2x8x256xf32, #tpu.memory_space<vmem>>) attributes {dimension_semantics = [#tpu.dimension_semantics<parallel>, #tpu.dimension_semantics<parallel>], iteration_bounds = array<i64: 1, 1>, scalar_prefetch = 0 : i64, scratch_operands = 0 : i64, tpu.core_type = #tpu.core_type<tc>, window_params = [{transform_indices = @transform_0, window_bounds = array<i64: 2, 8, 256>}, {transform_indices = @transform_1, window_bounds = array<i64: 2, 8, 256>}, {pipeline_mode = #tpu.pipeline_mode<synchronous>, transform_indices = @transform_2, window_bounds = array<i64: 4, 8>}, {pipeline_mode = #tpu.pipeline_mode<synchronous>, transform_indices = @transform_3, window_bounds = array<i64: 4, 8>}, {pipeline_mode = #tpu.pipeline_mode<synchronous>, transform_indices = @transform_4, window_bounds = array<i64: 4, 1>}, {pipeline_mode = #tpu.pipeline_mode<synchronous>, transform_indices = @transform_5, window_bounds = array<i64: 4, 1>}, {pipeline_mode = #tpu.pipeline_mode<synchronous>, transform_indices = @transform_6, window_bounds = array<i64: 1, 1>}, {transform_indices = @transform_7, window_bounds = array<i64: 2, 8, 256>}]} {
    %c0 = arith.constant 0 : index
    %c0_0 = arith.constant 0 : index
    %0 = vector.load %arg4[%c0, %c0_0] : memref<4x8xf32, #tpu.memory_space<vmem>>, vector<4x8xf32>
    %c0_1 = arith.constant 0 : index
    %c0_2 = arith.constant 0 : index
    %1 = vector.load %arg5[%c0_1, %c0_2] : memref<4x8xf32, #tpu.memory_space<vmem>>, vector<4x8xf32>
    %c0_3 = arith.constant 0 : index
    %c0_4 = arith.constant 0 : index
    %2 = vector.load %arg6[%c0_3, %c0_4] : memref<4x1xf32, #tpu.memory_space<vmem>>, vector<4x1xf32>
    %c0_5 = arith.constant 0 : index
    %c0_6 = arith.constant 0 : index
    %3 = vector.load %arg7[%c0_5, %c0_6] : memref<4x1xf32, #tpu.memory_space<vmem>>, vector<4x1xf32>
    %c0_7 = arith.constant 0 : index
    %c0_8 = arith.constant 0 : index
    %4 = vector.load %arg8[%c0_7, %c0_8] : memref<1x1xf32, #tpu.memory_space<vmem>>, vector<1x1xf32>
    %c0_9 = arith.constant 0 : index
    %c0_10 = arith.constant 0 : index
    %c0_11 = arith.constant 0 : index
    %5 = vector.load %arg2[%c0_9, %c0_10, %c0_11] : memref<2x8x256xf32, #tpu.memory_space<vmem>>, vector<1x8x256xf32>
    %6 = vector.shape_cast %5 : vector<1x8x256xf32> to vector<8x256xf32>
    %c0_12 = arith.constant 0 : index
    %c0_13 = arith.constant 0 : index
    %c0_14 = arith.constant 0 : index
    %7 = vector.load %arg3[%c0_12, %c0_13, %c0_14] : memref<2x8x256xf32, #tpu.memory_space<vmem>>, vector<1x8x256xf32>
    %8 = vector.shape_cast %7 : vector<1x8x256xf32> to vector<8x256xf32>
    %cst = arith.constant dense<0.000000e+00> : vector<4x256xf32>
    %9 = tpu.matmul %0, %6, %cst {dimension_numbers = #tpu.dot_dimension_numbers<[1], [0], [0], [1], [0, 0, 1, 1], [], []>} : vector<4x8xf32>, vector<8x256xf32>, vector<4x256xf32> -> vector<4x256xf32>
    %cst_15 = arith.constant dense<0.000000e+00> : vector<4x256xf32>
    %10 = tpu.matmul %1, %8, %cst_15 {dimension_numbers = #tpu.dot_dimension_numbers<[1], [0], [0], [1], [0, 0, 1, 1], [], []>} : vector<4x8xf32>, vector<8x256xf32>, vector<4x256xf32> -> vector<4x256xf32>
    %11 = arith.addf %9, %10 : vector<4x256xf32>
    %12 = vector.broadcast %2 : vector<4x1xf32> to vector<4x256xf32>
    %13 = arith.addf %11, %12 : vector<4x256xf32>
    %cst_16 = arith.constant 0.000000e+00 : f32
    %14 = vector.broadcast %cst_16 : f32 to vector<4x256xf32>
    %15 = arith.maximumf %13, %14 : vector<4x256xf32>
    %16 = vector.broadcast %3 : vector<4x1xf32> to vector<4x256xf32>
    %17 = arith.mulf %15, %16 : vector<4x256xf32>
    %cst_17 = arith.constant dense<0.000000e+00> : vector<256xf32>
    %18 = vector.multi_reduction <add>, %17, %cst_17 [0] : vector<4x256xf32> to vector<256xf32>
    %19 = vector.shape_cast %18 : vector<256xf32> to vector<1x256xf32>
    %20 = vector.broadcast %4 : vector<1x1xf32> to vector<1x256xf32>
    %21 = arith.addf %19, %20 : vector<1x256xf32>
    %22 = arith.negf %21 : vector<1x256xf32>
    %23 = math.exp %22 : vector<1x256xf32>
    %cst_18 = arith.constant 1.000000e+00 : f32
    %24 = vector.broadcast %cst_18 : f32 to vector<1x256xf32>
    %25 = arith.addf %24, %23 : vector<1x256xf32>
    %26 = arith.divf %24, %25 : vector<1x256xf32>
    %27 = vector.broadcast %26 : vector<1x256xf32> to vector<8x256xf32>
    %28 = arith.mulf %8, %27 : vector<8x256xf32>
    %c0_19 = arith.constant 0 : index
    %c0_20 = arith.constant 0 : index
    %c0_21 = arith.constant 0 : index
    %29 = vector.load %arg9[%c0_19, %c0_20, %c0_21] : memref<2x8x256xf32, #tpu.memory_space<vmem>>, vector<1x8x256xf32>
    %30 = vector.shape_cast %29 : vector<1x8x256xf32> to vector<8x256xf32>
    %31 = vector.shape_cast %28 : vector<8x256xf32> to vector<1x8x256xf32>
    tpu.vector_store %arg9[%c0_19, %c0_20, %c0_21], %31 {strides = array<i32>} : memref<2x8x256xf32, #tpu.memory_space<vmem>>, vector<1x8x256xf32>,
    %c1 = arith.constant 1 : index
    %c0_22 = arith.constant 0 : index
    %c0_23 = arith.constant 0 : index
    %32 = vector.load %arg2[%c1, %c0_22, %c0_23] : memref<2x8x256xf32, #tpu.memory_space<vmem>>, vector<1x8x256xf32>
    %33 = vector.shape_cast %32 : vector<1x8x256xf32> to vector<8x256xf32>
    %c1_24 = arith.constant 1 : index
    %c0_25 = arith.constant 0 : index
    %c0_26 = arith.constant 0 : index
    %34 = vector.load %arg3[%c1_24, %c0_25, %c0_26] : memref<2x8x256xf32, #tpu.memory_space<vmem>>, vector<1x8x256xf32>
    %35 = vector.shape_cast %34 : vector<1x8x256xf32> to vector<8x256xf32>
    %cst_27 = arith.constant dense<0.000000e+00> : vector<4x256xf32>
    %36 = tpu.matmul %0, %33, %cst_27 {dimension_numbers = #tpu.dot_dimension_numbers<[1], [0], [0], [1], [0, 0, 1, 1], [], []>} : vector<4x8xf32>, vector<8x256xf32>, vector<4x256xf32> -> vector<4x256xf32>
    %cst_28 = arith.constant dense<0.000000e+00> : vector<4x256xf32>
    %37 = tpu.matmul %1, %35, %cst_28 {dimension_numbers = #tpu.dot_dimension_numbers<[1], [0], [0], [1], [0, 0, 1, 1], [], []>} : vector<4x8xf32>, vector<8x256xf32>, vector<4x256xf32> -> vector<4x256xf32>
    %38 = arith.addf %36, %37 : vector<4x256xf32>
    %39 = vector.broadcast %2 : vector<4x1xf32> to vector<4x256xf32>
    %40 = arith.addf %38, %39 : vector<4x256xf32>
    %cst_29 = arith.constant 0.000000e+00 : f32
    %41 = vector.broadcast %cst_29 : f32 to vector<4x256xf32>
    %42 = arith.maximumf %40, %41 : vector<4x256xf32>
    %43 = vector.broadcast %3 : vector<4x1xf32> to vector<4x256xf32>
    %44 = arith.mulf %42, %43 : vector<4x256xf32>
    %cst_30 = arith.constant dense<0.000000e+00> : vector<256xf32>
    %45 = vector.multi_reduction <add>, %44, %cst_30 [0] : vector<4x256xf32> to vector<256xf32>
    %46 = vector.shape_cast %45 : vector<256xf32> to vector<1x256xf32>
    %47 = vector.broadcast %4 : vector<1x1xf32> to vector<1x256xf32>
    %48 = arith.addf %46, %47 : vector<1x256xf32>
    %49 = arith.negf %48 : vector<1x256xf32>
    %50 = math.exp %49 : vector<1x256xf32>
    %cst_31 = arith.constant 1.000000e+00 : f32
    %51 = vector.broadcast %cst_31 : f32 to vector<1x256xf32>
    %52 = arith.addf %51, %50 : vector<1x256xf32>
    %53 = arith.divf %51, %52 : vector<1x256xf32>
    %54 = vector.broadcast %53 : vector<1x256xf32> to vector<8x256xf32>
    %55 = arith.mulf %35, %54 : vector<8x256xf32>
    %c1_32 = arith.constant 1 : index
    %c0_33 = arith.constant 0 : index
    %c0_34 = arith.constant 0 : index
    %56 = vector.load %arg9[%c1_32, %c0_33, %c0_34] : memref<2x8x256xf32, #tpu.memory_space<vmem>>, vector<1x8x256xf32>
    %57 = vector.shape_cast %56 : vector<1x8x256xf32> to vector<8x256xf32>
    %58 = vector.shape_cast %55 : vector<8x256xf32> to vector<1x8x256xf32>
    tpu.vector_store %arg9[%c1_32, %c0_33, %c0_34], %58 {strides = array<i32>} : memref<2x8x256xf32, #tpu.memory_space<vmem>>, vector<1x8x256xf32>,
    return
  }
  func.func @transform_0(%arg0: i32, %arg1: i32) -> (i32, i32, i32) {
    %c0_i32 = arith.constant 0 : i32
    %c0_i32_0 = arith.constant 0 : i32
    return %arg0, %c0_i32, %arg1 : i32, i32, i32
  }
  func.func @transform_1(%arg0: i32, %arg1: i32) -> (i32, i32, i32) {
    %c0_i32 = arith.constant 0 : i32
    %c0_i32_0 = arith.constant 0 : i32
    return %arg0, %c0_i32, %arg1 : i32, i32, i32
  }
  func.func @transform_2(%arg0: i32, %arg1: i32) -> (i32, i32) {
    %c0_i32 = arith.constant 0 : i32
    %c0_i32_0 = arith.constant 0 : i32
    %c0_i32_1 = arith.constant 0 : i32
    return %c0_i32, %c0_i32_0 : i32, i32
  }
  func.func @transform_3(%arg0: i32, %arg1: i32) -> (i32, i32) {
    %c0_i32 = arith.constant 0 : i32
    %c0_i32_0 = arith.constant 0 : i32
    %c0_i32_1 = arith.constant 0 : i32
    return %c0_i32, %c0_i32_0 : i32, i32
  }
  func.func @transform_4(%arg0: i32, %arg1: i32) -> (i32, i32) {
    %c0_i32 = arith.constant 0 : i32
    %c0_i32_0 = arith.constant 0 : i32
    %c0_i32_1 = arith.constant 0 : i32
    return %c0_i32, %c0_i32_0 : i32, i32
  }
  func.func @transform_5(%arg0: i32, %arg1: i32) -> (i32, i32) {
    %c0_i32 = arith.constant 0 : i32
    %c0_i32_0 = arith.constant 0 : i32
    %c0_i32_1 = arith.constant 0 : i32
    return %c0_i32, %c0_i32_0 : i32, i32
  }
  func.func @transform_6(%arg0: i32, %arg1: i32) -> (i32, i32) {
    %c0_i32 = arith.constant 0 : i32
    %c0_i32_0 = arith.constant 0 : i32
    %c0_i32_1 = arith.constant 0 : i32
    return %c0_i32, %c0_i32_0 : i32, i32
  }
  func.func @transform_7(%arg0: i32, %arg1: i32) -> (i32, i32, i32) {
    %c0_i32 = arith.constant 0 : i32
    %c0_i32_0 = arith.constant 0 : i32
    return %arg0, %c0_i32, %arg1 : i32, i32, i32
  }
}

</mosaic_0001>

<llo_original>
// kernel: tpu_custom_call.1
$region0: #{tpu_custom_call.1}
  #allocation0 [shape = 'u32[]', space=smem, size = 0x4, offset = 0x4, fixed_abs, tag = 'smem constant byte address 0x4 - core index']
  #allocation1 [shape = 'u32[144,128]{1,0:T(1,128)}', space=vmem, size = 0x12000, scoped, tag = 'internal scratch']
  #allocation2 [shape = 'f32[1,1]{1,0:T(1,128)S(1)}', space=vmem, size = 0x200, scoped, tag = 'scoped memory for tpu_custom_call.1']
  %s0 = inlined_call_operand.hbm [shape: f32[2,8,256], index: 0, kind: input, shape index: {}]
  %s1 = inlined_call_operand.hbm [shape: f32[2,8,256], index: 1, kind: input, shape index: {}]
  %s2 = inlined_call_operand.vmem [shape: f32[4,8], index: 2, kind: input, shape index: {}]
  %s3 = inlined_call_operand.vmem [shape: f32[4,8], index: 3, kind: input, shape index: {}]
  %s4 = inlined_call_operand.vmem [shape: f32[4,1], index: 4, kind: input, shape index: {}]
  %s5 = inlined_call_operand.vmem [shape: f32[4,1], index: 5, kind: input, shape index: {}]
  %s6 = inlined_call_operand.<no memory space> [shape: f32[1,1], index: 6, kind: input, shape index: {}]
  %s7 = inlined_call_operand.hbm [shape: f32[2,8,256], index: 7, kind: output, shape index: {}]
  %s8 = sld [smem:[#allocation0]]
  $region46: #{tpu_custom_call.1} parent=0
    _
  %s10 = ssub.s32 1, %s8
  %s11 = scalar_select 0, %s10, %s8
  %v12 = vstv %s6
  %13 = vst [vmem:[#allocation2] sm:$0x1] %v12
  $region1: #{tpu_custom_call.1} parent=0
    #allocation3 [shape = 'u8[16384]{0}', space=vmem, size = 0x4000, scoped, tag = 'input window, operand 0, single buffered']
    #allocation4 [shape = 's32[1]{0}', space=sflag, size = 0x4, scoped, tag = 'scoped memory for tpu_custom_call.1']
    #allocation5 [shape = 's32[1]{0}', space=sflag, size = 0x4, scoped, tag = 'scoped memory for tpu_custom_call.1']
    #allocation6 [shape = 'u8[16384]{0}', space=vmem, size = 0x4000, scoped, tag = 'input window, operand 1, single buffered']
    #allocation7 [shape = 's32[1]{0}', space=sflag, size = 0x4, scoped, tag = 'scoped memory for tpu_custom_call.1']
    #allocation8 [shape = 'u8[16384]{0}', space=vmem, size = 0x4000, scoped, tag = 'output window, operand 0, single buffered']
    %14 = vsyncpa [#allocation4], 0
    %15 = vsyncpa [#allocation7], 0
    %16 = vsyncpa [#allocation5], 0
    // Predicated region
    $region2: #{tpu_custom_call.1} parent=1 // pred_check
      _
    $region3: #{tpu_custom_call.1} parent=1 // pred_check_branch
      %18 = sbr.rel (0) target = $region5
    $region4: #{tpu_custom_call.1} parent=1 // pred_region
      %s20 = ssub.s32 512, 512
      %21 = vsyncadd [#allocation4], %s20
      %s22 = sshll.u32 [#allocation3], 4
      %s23 = int_to_ptr.vmem [resolvable:$true] %s22
      %28 = dma.hbm_to_vmem [thread:$0]  %s0, 512, %s23, [#allocation4], 256, 256, 16
    $region5: #{tpu_custom_call.1} parent=1 // pred_fallthru
      _
    // Predicated region
    $region6: #{tpu_custom_call.1} parent=1 // pred_check
      _
    $region7: #{tpu_custom_call.1} parent=1 // pred_check_branch
      %30 = sbr.rel (0) target = $region9
    $region8: #{tpu_custom_call.1} parent=1 // pred_region
      %s32 = ssub.s32 512, 512
      %33 = vsyncadd [#allocation7], %s32
      %s34 = sshll.u32 [#allocation6], 4
      %s35 = int_to_ptr.vmem [resolvable:$true] %s34
      %40 = dma.hbm_to_vmem [thread:$0]  %s1, 512, %s35, [#allocation7], 256, 256, 16
    $region9: #{tpu_custom_call.1} parent=1 // pred_fallthru
      _
    // Predicated region
    $region10: #{tpu_custom_call.1} parent=1 // pred_check
      _
    $region11: #{tpu_custom_call.1} parent=1 // pred_check_branch
      %42 = sbr.rel (0) target = $region13
    $region12: #{tpu_custom_call.1} parent=1 // pred_region
      _
    $region13: #{tpu_custom_call.1} parent=1 // pred_fallthru
      _
    // Predicated region
    $region14: #{tpu_custom_call.1} parent=1 // pred_check
      _
    $region15: #{tpu_custom_call.1} parent=1 // pred_check_branch
      %44 = sbr.rel (0) target = $region17
    $region16: #{tpu_custom_call.1} parent=1 // pred_region
      _
    $region17: #{tpu_custom_call.1} parent=1 // pred_fallthru
      _
    // Predicated region
    $region18: #{tpu_custom_call.1} parent=1 // pred_check
      _
    $region19: #{tpu_custom_call.1} parent=1 // pred_check_branch
      %46 = sbr.rel (0) target = $region21
    $region20: #{tpu_custom_call.1} parent=1 // pred_region
      _
    $region21: #{tpu_custom_call.1} parent=1 // pred_fallthru
      _
    // Predicated region
    $region22: #{tpu_custom_call.1} parent=1 // pred_check
      _
    $region23: #{tpu_custom_call.1} parent=1 // pred_check_branch
      %48 = sbr.rel (0) target = $region25
    $region24: #{tpu_custom_call.1} parent=1 // pred_region
      _
    $region25: #{tpu_custom_call.1} parent=1 // pred_fallthru
      _
    // Predicated region
    $region26: #{tpu_custom_call.1} parent=1 // pred_check
      _
    $region27: #{tpu_custom_call.1} parent=1 // pred_check_branch
      %50 = sbr.rel (0) target = $region29
    $region28: #{tpu_custom_call.1} parent=1 // pred_region
      _
    $region29: #{tpu_custom_call.1} parent=1 // pred_fallthru
      _
    // Predicated region
    $region30: #{tpu_custom_call.1} parent=1 // pred_check
      _
    $region31: #{tpu_custom_call.1} parent=1 // pred_check_branch
      %52 = sbr.rel (0) target = $region33
    $region32: #{tpu_custom_call.1} parent=1 // pred_region
      %53 = dma.done [#allocation4], 512
    $region33: #{tpu_custom_call.1} parent=1 // pred_fallthru
      _
    // Predicated region
    $region34: #{tpu_custom_call.1} parent=1 // pred_check
      _
    $region35: #{tpu_custom_call.1} parent=1 // pred_check_branch
      %55 = sbr.rel (0) target = $region37
    $region36: #{tpu_custom_call.1} parent=1 // pred_region
      %56 = dma.done [#allocation7], 512
    $region37: #{tpu_custom_call.1} parent=1 // pred_fallthru
      _
    %v57 = vld [vmem:[%s2] sm:$0xf]
    %v58 = vld [vmem:[%s3] sm:$0xf]
    %v59 = vld [vmem:[%s4] sm:$0xf]
    %v60 = vld [vmem:[%s5] sm:$0xf]
    %v61 = vld [vmem:[#allocation2] sm:$0x1]
    %v62 = vld [vmem:[#allocation3] sm:$0xff]
    %v63 = vld [vmem:[#allocation3 + $0x8] sm:$0xff]
    %v64 = vld [vmem:[#allocation6] sm:$0xff]
    %v65 = vld [vmem:[#allocation6 + $0x8] sm:$0xff]
    %vm66 = vcmask 64512
    %v68 = vsel %vm66, %v58, 0
    %70 = vmatprep.subr.mxu0 %v65
    %71 = vmatpush1.msra.mxu0 %v64
    %72 = vmatprep.subr.mxu0 0.0
    %73 = vmatpush1.msra.mxu0 0.0
    %74 = vmatprep.subr.mxu0 0.0
    %75 = vmatpush1.msra.mxu0 0.0
    %76 = vmatprep.subr.mxu0 0.0
    %77 = vmatpush1.msra.mxu0 0.0
    %78 = vmatprep.subr.mxu0 0.0
    %79 = vmatpush1.msra.mxu0 0.0
    %80 = vmatprep.subr.mxu0 0.0
    %81 = vmatpush1.msra.mxu0 0.0
    %82 = vmatprep.subr.mxu0 0.0
    %83 = vmatpush1.msra.mxu0 0.0
    %84 = vmatprep.subr.mxu0 0.0
    %85 = vmatpush1.msra.mxu0 0.0
    %86 = vmatprep.subr.mxu0 0.0
    %87 = vmatpush1.msra.mxu0 0.0
    %88 = vmatprep.subr.mxu0 0.0
    %89 = vmatpush1.msra.mxu0 0.0
    %90 = vmatprep.subr.mxu0 0.0
    %91 = vmatpush1.msra.mxu0 0.0
    %92 = vmatprep.subr.mxu0 0.0
    %93 = vmatpush1.msra.mxu0 0.0
    %94 = vmatprep.subr.mxu0 0.0
    %95 = vmatpush1.msra.mxu0 0.0
    %96 = vmatprep.subr.mxu0 0.0
    %97 = vmatpush1.msra.mxu0 0.0
    %98 = vmatprep.subr.mxu0 0.0
    %99 = vmatpush1.msra.mxu0 0.0
    %100 = vmatprep.subr.mxu0 0.0
    %101 = vmatpush1.msra.mxu0 0.0
    %102 = vmatprep.subr.mxu0 0.0
    %103 = vmatpush1.msra.mxu0 0.0
    %104 = vmatprep.subr.mxu0 0.0
    %105 = vmatpush1.msra.mxu0 0.0
    %106 = vmatprep.subr.mxu0 0.0
    %107 = vmatpush1.msra.mxu0 0.0
    %108 = vmatprep.subr.mxu0 0.0
    %109 = vmatpush1.msra.mxu0 0.0
    %110 = vmatprep.subr.mxu0 0.0
    %111 = vmatpush1.msra.mxu0 0.0
    %112 = vmatprep.subr.mxu0 0.0
    %113 = vmatpush1.msra.mxu0 0.0
    %114 = vmatprep.subr.mxu0 0.0
    %115 = vmatpush1.msra.mxu0 0.0
    %116 = vmatprep.subr.mxu0 0.0
    %117 = vmatpush1.msra.mxu0 0.0
    %118 = vmatprep.subr.mxu0 0.0
    %119 = vmatpush1.msra.mxu0 0.0
    %120 = vmatprep.subr.mxu0 0.0
    %121 = vmatpush1.msra.mxu0 0.0
    %122 = vmatprep.subr.mxu0 0.0
    %123 = vmatpush1.msra.mxu0 0.0
    %124 = vmatprep.subr.mxu0 0.0
    %125 = vmatpush1.msra.mxu0 0.0
    %126 = vmatprep.subr.mxu0 0.0
    %127 = vmatpush1.msra.mxu0 0.0
    %128 = vmatprep.subr.mxu0 0.0
    %129 = vmatpush1.msra.mxu0 0.0
    %130 = vmatprep.subr.mxu0 0.0
    %131 = vmatpush1.msra.mxu0 0.0
    %132 = vmatprep.subr.mxu0 0.0
    %133 = vmatpush1.msra.mxu0 0.0
    %134 = vmatprep.mubr.f32.mxu0 0.0
    %135 = vmatmul.mubr.f32.gmra.mrb[0].mxu0 %v68
    %v136 = vpop.f32.mrb[0].mxu0
    %v137 = vadd.f32 0.0, %v136
    %v138 = vpop.f32.mrb[0].mxu0
    %v139 = vadd.f32 0.0, %v138
    %140 = vdwg.mxu0
    %v142 = vsel %vm66, %v57, 0
    %144 = vmatprep.subr.mxu0 %v63
    %145 = vmatpush1.msra.mxu0 %v62
    %146 = vmatprep.subr.mxu0 0.0
    %147 = vmatpush1.msra.mxu0 0.0
    %148 = vmatprep.subr.mxu0 0.0
    %149 = vmatpush1.msra.mxu0 0.0
    %150 = vmatprep.subr.mxu0 0.0
    %151 = vmatpush1.msra.mxu0 0.0
    %152 = vmatprep.subr.mxu0 0.0
    %153 = vmatpush1.msra.mxu0 0.0
    %154 = vmatprep.subr.mxu0 0.0
    %155 = vmatpush1.msra.mxu0 0.0
    %156 = vmatprep.subr.mxu0 0.0
    %157 = vmatpush1.msra.mxu0 0.0
    %158 = vmatprep.subr.mxu0 0.0
    %159 = vmatpush1.msra.mxu0 0.0
    %160 = vmatprep.subr.mxu0 0.0
    %161 = vmatpush1.msra.mxu0 0.0
    %162 = vmatprep.subr.mxu0 0.0
    %163 = vmatpush1.msra.mxu0 0.0
    %164 = vmatprep.subr.mxu0 0.0
    %165 = vmatpush1.msra.mxu0 0.0
    %166 = vmatprep.subr.mxu0 0.0
    %167 = vmatpush1.msra.mxu0 0.0
    %168 = vmatprep.subr.mxu0 0.0
    %169 = vmatpush1.msra.mxu0 0.0
    %170 = vmatprep.subr.mxu0 0.0
    %171 = vmatpush1.msra.mxu0 0.0
    %172 = vmatprep.subr.mxu0 0.0
    %173 = vmatpush1.msra.mxu0 0.0
    %174 = vmatprep.subr.mxu0 0.0
    %175 = vmatpush1.msra.mxu0 0.0
    %176 = vmatprep.subr.mxu0 0.0
    %177 = vmatpush1.msra.mxu0 0.0
    %178 = vmatprep.subr.mxu0 0.0
    %179 = vmatpush1.msra.mxu0 0.0
    %180 = vmatprep.subr.mxu0 0.0
    %181 = vmatpush1.msra.mxu0 0.0
    %182 = vmatprep.subr.mxu0 0.0
    %183 = vmatpush1.msra.mxu0 0.0
    %184 = vmatprep.subr.mxu0 0.0
    %185 = vmatpush1.msra.mxu0 0.0
    %186 = vmatprep.subr.mxu0 0.0
    %187 = vmatpush1.msra.mxu0 0.0
    %188 = vmatprep.subr.mxu0 0.0
    %189 = vmatpush1.msra.mxu0 0.0
    %190 = vmatprep.subr.mxu0 0.0
    %191 = vmatpush1.msra.mxu0 0.0
    %192 = vmatprep.subr.mxu0 0.0
    %193 = vmatpush1.msra.mxu0 0.0
    %194 = vmatprep.subr.mxu0 0.0
    %195 = vmatpush1.msra.mxu0 0.0
    %196 = vmatprep.subr.mxu0 0.0
    %197 = vmatpush1.msra.mxu0 0.0
    %198 = vmatprep.subr.mxu0 0.0
    %199 = vmatpush1.msra.mxu0 0.0
    %200 = vmatprep.subr.mxu0 0.0
    %201 = vmatpush1.msra.mxu0 0.0
    %202 = vmatprep.subr.mxu0 0.0
    %203 = vmatpush1.msra.mxu0 0.0
    %204 = vmatprep.subr.mxu0 0.0
    %205 = vmatpush1.msra.mxu0 0.0
    %206 = vmatprep.subr.mxu0 0.0
    %207 = vmatpush1.msra.mxu0 0.0
    %208 = vmatprep.mubr.f32.mxu0 0.0
    %209 = vmatmul.mubr.f32.gmra.mrb[0].mxu0 %v142
    %v210 = vpop.f32.mrb[0].mxu0
    %v211 = vadd.f32 %v137, %v210
    %v212 = vpop.f32.mrb[0].mxu0
    %v213 = vadd.f32 %v139, %v212
    %214 = vdwg.mxu0
    %216 = vset.pattern.permute.xlu0 0
    %217 = vperm.xlu0 %216, %v59
    %v218 = vpop.permute.xlu0 %217
    %v220 = vadd.f32 %v211, %v218
    %v221 = vadd.f32 %v213, %v218
    %v222 = vmax.f32 %v220, 0.0
    %v223 = vmax.f32 %v221, 0.0
    %225 = vset.pattern.permute.xlu0 0
    %226 = vperm.xlu0 %225, %v60
    %v227 = vpop.permute.xlu0 %226
    %v229 = vmul.f32 %v222, %v227
    %v230 = vmul.f32 %v223, %v227
    %vm231 = vcmask 1043456
    %v232 = vsel %vm231, %v229, 0.0
    %v233 = vrot.slane %v232, 4
    %v234 = vadd.f32 %v232, %v233
    %v235 = vrot.slane %v234, 2
    %v236 = vadd.f32 %v234, %v235
    %v237 = vrot.slane %v236, 1
    %v238 = vadd.f32 %v236, %v237
    %v239 = vsel %vm231, %v230, 0.0
    %v240 = vrot.slane %v239, 4
    %v241 = vadd.f32 %v239, %v240
    %v242 = vrot.slane %v241, 2
    %v243 = vadd.f32 %v241, %v242
    %v244 = vrot.slane %v243, 1
    %v245 = vadd.f32 %v243, %v244
    %247 = vset.pattern.permute.xlu0 0
    %248 = vperm.xlu0 %247, %v61
    %v249 = vpop.permute.xlu0 %248
    %v251 = vlaneseq
    %v252 = vshrl.u32 %v251, 7
    %v253 = vsub.s32 0, %v252
    %v254 = vrot.slane %v249, %v253
    %v255 = vadd.f32 %v238, %v254
    %v256 = vadd.f32 %v245, %v254
    %v257 = vxor.u32 %v255, 2147483648
    %v258 = vxor.u32 %v256, 2147483648
    %v259 = vmul.f32 %v257, 1.442695
    %v260 = vpow.pop %v259
    %v261 = vmul.f32 %v258, 1.442695
    %v262 = vpow.pop %v261
    %v263 = vadd.f32 %v260, 1.0
    %v264 = vadd.f32 %v262, 1.0
    %v265 = vrcp.pop %v263
    %v266 = vmul.f32 1.0, %v265
    %v267 = vrcp.pop %v264
    %v268 = vmul.f32 1.0, %v267
    %v269 = vmul.f32 %v64, %v266
    %v270 = vmul.f32 %v65, %v268
    %271 = vst [vmem:[#allocation8] sm:$0xff] %v269
    %272 = vst [vmem:[#allocation8 + $0x8] sm:$0xff] %v270
    %s273 = scalar_lea.vmem [#allocation3], 16
    %v274 = vld [vmem:[%s273] sm:$0xff]
    %v275 = vld [vmem:[%s273 + $0x8] sm:$0xff]
    %s276 = scalar_lea.vmem [#allocation6], 16
    %v277 = vld [vmem:[%s276] sm:$0xff]
    %v278 = vld [vmem:[%s276 + $0x8] sm:$0xff]
    %279 = vmatprep.subr.mxu0 %v278
    %280 = vmatpush1.msra.mxu0 %v277
    %281 = vmatprep.subr.mxu0 0.0
    %282 = vmatpush1.msra.mxu0 0.0
    %283 = vmatprep.subr.mxu0 0.0
    %284 = vmatpush1.msra.mxu0 0.0
    %285 = vmatprep.subr.mxu0 0.0
    %286 = vmatpush1.msra.mxu0 0.0
    %287 = vmatprep.subr.mxu0 0.0
    %288 = vmatpush1.msra.mxu0 0.0
    %289 = vmatprep.subr.mxu0 0.0
    %290 = vmatpush1.msra.mxu0 0.0
    %291 = vmatprep.subr.mxu0 0.0
    %292 = vmatpush1.msra.mxu0 0.0
    %293 = vmatprep.subr.mxu0 0.0
    %294 = vmatpush1.msra.mxu0 0.0
    %295 = vmatprep.subr.mxu0 0.0
    %296 = vmatpush1.msra.mxu0 0.0
    %297 = vmatprep.subr.mxu0 0.0
    %298 = vmatpush1.msra.mxu0 0.0
    %299 = vmatprep.subr.mxu0 0.0
    %300 = vmatpush1.msra.mxu0 0.0
    %301 = vmatprep.subr.mxu0 0.0
    %302 = vmatpush1.msra.mxu0 0.0
    %303 = vmatprep.subr.mxu0 0.0
    %304 = vmatpush1.msra.mxu0 0.0
    %305 = vmatprep.subr.mxu0 0.0
    %306 = vmatpush1.msra.mxu0 0.0
    %307 = vmatprep.subr.mxu0 0.0
    %308 = vmatpush1.msra.mxu0 0.0
    %309 = vmatprep.subr.mxu0 0.0
    %310 = vmatpush1.msra.mxu0 0.0
    %311 = vmatprep.subr.mxu0 0.0
    %312 = vmatpush1.msra.mxu0 0.0
    %313 = vmatprep.subr.mxu0 0.0
    %314 = vmatpush1.msra.mxu0 0.0
    %315 = vmatprep.subr.mxu0 0.0
    %316 = vmatpush1.msra.mxu0 0.0
    %317 = vmatprep.subr.mxu0 0.0
    %318 = vmatpush1.msra.mxu0 0.0
    %319 = vmatprep.subr.mxu0 0.0
    %320 = vmatpush1.msra.mxu0 0.0
    %321 = vmatprep.subr.mxu0 0.0
    %322 = vmatpush1.msra.mxu0 0.0
    %323 = vmatprep.subr.mxu0 0.0
    %324 = vmatpush1.msra.mxu0 0.0
    %325 = vmatprep.subr.mxu0 0.0
    %326 = vmatpush1.msra.mxu0 0.0
    %327 = vmatprep.subr.mxu0 0.0
    %328 = vmatpush1.msra.mxu0 0.0
    %329 = vmatprep.subr.mxu0 0.0
    %330 = vmatpush1.msra.mxu0 0.0
    %331 = vmatprep.subr.mxu0 0.0
    %332 = vmatpush1.msra.mxu0 0.0
    %333 = vmatprep.subr.mxu0 0.0
    %334 = vmatpush1.msra.mxu0 0.0
    %335 = vmatprep.subr.mxu0 0.0
    %336 = vmatpush1.msra.mxu0 0.0
    %337 = vmatprep.subr.mxu0 0.0
    %338 = vmatpush1.msra.mxu0 0.0
    %339 = vmatprep.subr.mxu0 0.0
    %340 = vmatpush1.msra.mxu0 0.0
    %341 = vmatprep.subr.mxu0 0.0
    %342 = vmatpush1.msra.mxu0 0.0
    %343 = vmatprep.mubr.f32.mxu0 0.0
    %344 = vmatmul.mubr.f32.gmra.mrb[0].mxu0 %v68
    %v345 = vpop.f32.mrb[0].mxu0
    %v346 = vadd.f32 0.0, %v345
    %v347 = vpop.f32.mrb[0].mxu0
    %v348 = vadd.f32 0.0, %v347
    %349 = vdwg.mxu0
    %350 = vmatprep.subr.mxu0 %v275
    %351 = vmatpush1.msra.mxu0 %v274
    %352 = vmatprep.subr.mxu0 0.0
    %353 = vmatpush1.msra.mxu0 0.0
    %354 = vmatprep.subr.mxu0 0.0
    %355 = vmatpush1.msra.mxu0 0.0
    %356 = vmatprep.subr.mxu0 0.0
    %357 = vmatpush1.msra.mxu0 0.0
    %358 = vmatprep.subr.mxu0 0.0
    %359 = vmatpush1.msra.mxu0 0.0
    %360 = vmatprep.subr.mxu0 0.0
    %361 = vmatpush1.msra.mxu0 0.0
    %362 = vmatprep.subr.mxu0 0.0
    %363 = vmatpush1.msra.mxu0 0.0
    %364 = vmatprep.subr.mxu0 0.0
    %365 = vmatpush1.msra.mxu0 0.0
    %366 = vmatprep.subr.mxu0 0.0
    %367 = vmatpush1.msra.mxu0 0.0
    %368 = vmatprep.subr.mxu0 0.0
    %369 = vmatpush1.msra.mxu0 0.0
    %370 = vmatprep.subr.mxu0 0.0
    %371 = vmatpush1.msra.mxu0 0.0
    %372 = vmatprep.subr.mxu0 0.0
    %373 = vmatpush1.msra.mxu0 0.0
    %374 = vmatprep.subr.mxu0 0.0
    %375 = vmatpush1.msra.mxu0 0.0
    %376 = vmatprep.subr.mxu0 0.0
    %377 = vmatpush1.msra.mxu0 0.0
    %378 = vmatprep.subr.mxu0 0.0
    %379 = vmatpush1.msra.mxu0 0.0
    %380 = vmatprep.subr.mxu0 0.0
    %381 = vmatpush1.msra.mxu0 0.0
    %382 = vmatprep.subr.mxu0 0.0
    %383 = vmatpush1.msra.mxu0 0.0
    %384 = vmatprep.subr.mxu0 0.0
    %385 = vmatpush1.msra.mxu0 0.0
    %386 = vmatprep.subr.mxu0 0.0
    %387 = vmatpush1.msra.mxu0 0.0
    %388 = vmatprep.subr.mxu0 0.0
    %389 = vmatpush1.msra.mxu0 0.0
    %390 = vmatprep.subr.mxu0 0.0
    %391 = vmatpush1.msra.mxu0 0.0
    %392 = vmatprep.subr.mxu0 0.0
    %393 = vmatpush1.msra.mxu0 0.0
    %394 = vmatprep.subr.mxu0 0.0
    %395 = vmatpush1.msra.mxu0 0.0
    %396 = vmatprep.subr.mxu0 0.0
    %397 = vmatpush1.msra.mxu0 0.0
    %398 = vmatprep.subr.mxu0 0.0
    %399 = vmatpush1.msra.mxu0 0.0
    %400 = vmatprep.subr.mxu0 0.0
    %401 = vmatpush1.msra.mxu0 0.0
    %402 = vmatprep.subr.mxu0 0.0
    %403 = vmatpush1.msra.mxu0 0.0
    %404 = vmatprep.subr.mxu0 0.0
    %405 = vmatpush1.msra.mxu0 0.0
    %406 = vmatprep.subr.mxu0 0.0
    %407 = vmatpush1.msra.mxu0 0.0
    %408 = vmatprep.subr.mxu0 0.0
    %409 = vmatpush1.msra.mxu0 0.0
    %410 = vmatprep.subr.mxu0 0.0
    %411 = vmatpush1.msra.mxu0 0.0
    %412 = vmatprep.subr.mxu0 0.0
    %413 = vmatpush1.msra.mxu0 0.0
    %414 = vmatprep.mubr.f32.mxu0 0.0
    %415 = vmatmul.mubr.f32.gmra.mrb[0].mxu0 %v142
    %v416 = vpop.f32.mrb[0].mxu0
    %v417 = vadd.f32 %v346, %v416
    %v418 = vpop.f32.mrb[0].mxu0
    %v419 = vadd.f32 %v348, %v418
    %420 = vdwg.mxu0
    %v421 = vadd.f32 %v417, %v218
    %v422 = vadd.f32 %v419, %v218
    %v423 = vmax.f32 %v421, 0.0
    %v424 = vmax.f32 %v422, 0.0
    %v425 = vmul.f32 %v423, %v227
    %v426 = vmul.f32 %v424, %v227
    %v427 = vsel %vm231, %v425, 0.0
    %v428 = vrot.slane %v427, 4
    %v429 = vadd.f32 %v427, %v428
    %v430 = vrot.slane %v429, 2
    %v431 = vadd.f32 %v429, %v430
    %v432 = vrot.slane %v431, 1
    %v433 = vadd.f32 %v431, %v432
    %v434 = vsel %vm231, %v426, 0.0
    %v435 = vrot.slane %v434, 4
    %v436 = vadd.f32 %v434, %v435
    %v437 = vrot.slane %v436, 2
    %v438 = vadd.f32 %v436, %v437
    %v439 = vrot.slane %v438, 1
    %v440 = vadd.f32 %v438, %v439
    %v441 = vadd.f32 %v433, %v254
    %v442 = vadd.f32 %v440, %v254
    %v443 = vxor.u32 %v441, 2147483648
    %v444 = vxor.u32 %v442, 2147483648
    %v445 = vmul.f32 %v443, 1.442695
    %v446 = vpow.pop %v445
    %v447 = vmul.f32 %v444, 1.442695
    %v448 = vpow.pop %v447
    %v449 = vadd.f32 %v446, 1.0
    %v450 = vadd.f32 %v448, 1.0
    %v451 = vrcp.pop %v449
    %v452 = vmul.f32 1.0, %v451
    %v453 = vrcp.pop %v450
    %v454 = vmul.f32 1.0, %v453
    %v455 = vmul.f32 %v277, %v452
    %v456 = vmul.f32 %v278, %v454
    %s457 = scalar_lea.vmem [#allocation8], 16
    %458 = vst [vmem:[%s457] sm:$0xff] %v455
    %459 = vst [vmem:[%s457 + $0x8] sm:$0xff] %v456
    // Predicated region
    $region38: #{tpu_custom_call.1} parent=1 // pred_check
      _
    $region39: #{tpu_custom_call.1} parent=1 // pred_check_branch
      %461 = sbr.rel (0) target = $region41
    $region40: #{tpu_custom_call.1} parent=1 // pred_region
      %s463 = ssub.s32 512, 512
      %464 = vsyncadd [#allocation5], %s463
      %s465 = sshll.u32 [#allocation8], 4
      %s466 = int_to_ptr.vmem [resolvable:$true] %s465
      %471 = dma.vmem_to_hbm [thread:$0]  %s466, 512, %s7, [#allocation5], 256, 256, 16
    $region41: #{tpu_custom_call.1} parent=1 // pred_fallthru
      _
    // Predicated region
    $region42: #{tpu_custom_call.1} parent=1 // pred_check
      _
    $region43: #{tpu_custom_call.1} parent=1 // pred_check_branch
      %473 = sbr.rel (0) target = $region45
    $region44: #{tpu_custom_call.1} parent=1 // pred_region
      %474 = dma.done [#allocation5], 512
    $region45: #{tpu_custom_call.1} parent=1 // pred_fallthru
      _
    %475 = vsyncpa [#allocation4], 1
    %476 = vsyncpa [#allocation7], 1
    %477 = vsyncpa [#allocation5], 1

</llo_original>
